<compile_context>
chip_gen: v5e
topology: v5e:2x2
jax: 0.10.0
libtpu: 0.0.40
codegen_flags: <defaults>
</compile_context>

<pallas_src>
import jax
import jax.numpy as jnp
import numpy as np
from jax import lax
from jax.experimental import pallas as pl
from jax.experimental.pallas import tpu as pltpu


def _prompt_add_kernel(x_ref, p_ref, o_ref):
    # x_ref: VMEM (TB, C*H*W) batch slab, lane-dense minor dim.
    # p_ref: VMEM (1,  C*H*W) prompt row — same block every grid step.
    # o_ref: VMEM (TB, C*H*W) output slab.
    # Pure memory-bound add; the (1, N) prompt row sublane-broadcasts over the
    # TB batch rows.  No MXU, no transcendentals, no casts.
    o_ref[...] = x_ref[...] + p_ref[...]


def _pick_batch_block(batch, bytes_per_row):
    """Rows of (B, C*H*W) per grid step: ~2 MiB of x per step, 8-row aligned."""
    target_rows = max(1, (2 * 1024 * 1024) // max(1, bytes_per_row))
    if target_rows >= batch:
        return batch                      # whole array in a single step
    tb = max(8, (target_rows // 8) * 8)   # keep the 8-sublane tiling aligned
    return min(tb, batch)


def random_patch_prompt_add(x, patch, offsets):
    """x: (B, C, H, W); patch: (1, C, P, P); offsets: (2,) int32 in [0, H-P)."""
    B, C, H, W = x.shape
    _, Cp, P, P2 = patch.shape
    assert Cp == C and P == P2
    CHW = C * H * W
    assert CHW % 128 == 0, "flattened lane dim must be a multiple of 128"

    # Prompt construction (plain XLA, runs once per call, not per batch row).
    # dynamic_update_slice clamps start indices, so offsets can never index OOB.
    prompt_row = lax.dynamic_update_slice(
        jnp.zeros((C, H, W), dtype=x.dtype),
        patch[0].astype(x.dtype),
        (jnp.int32(0), offsets[0], offsets[1]),
    ).reshape(1, CHW)

    # Lane-dense 2-D layout: minor dim C*H*W (multiple of 128 lanes), sublane
    # dim is batch rows.
    x2 = x.reshape(B, CHW)

    itemsize = jnp.dtype(x.dtype).itemsize
    bytes_per_row = CHW * itemsize
    tb = _pick_batch_block(B, bytes_per_row)
    grid = (pl.cdiv(B, tb),)

    # Per-step footprint: double-buffered x + out blocks, plus the prompt row
    # (single-buffered: its block index never changes).
    needed_vmem = 2 * 2 * tb * bytes_per_row + 2 * CHW * itemsize + (2 << 20)
    vmem_limit = int(max(needed_vmem, 32 * 1024 * 1024))

    out = pl.pallas_call(
        _prompt_add_kernel,
        out_shape=jax.ShapeDtypeStruct((B, CHW), x.dtype),
        grid_spec=pl.GridSpec(
            grid=grid,
            in_specs=[
                pl.BlockSpec((tb, CHW), lambda b: (b, 0)),
                pl.BlockSpec((1, CHW), lambda b: (0, 0)),
            ],
            out_specs=pl.BlockSpec((tb, CHW), lambda b: (b, 0)),
        ),
        compiler_params=pltpu.CompilerParams(
            dimension_semantics=("parallel",),
            vmem_limit_bytes=vmem_limit,
        ),
    )(x2, prompt_row)

    return out.reshape(B, C, H, W)


if __name__ == "__main__":
    B, C, isize, psize = 2, 3, 16, 4

    key = jax.random.PRNGKey(0)
    kx, kp, ko = jax.random.split(key, 3)

    # Deterministic inputs / parameters (patch ~ torch.randn([1, 3, P, P])).
    x = jax.random.normal(kx, (B, C, isize, isize), dtype=jnp.float32)
    patch = jax.random.normal(kp, (1, C, psize, psize), dtype=jnp.float32)

    # Deterministic stand-in for np.random.choice(isize - psize) (host RNG).
    offsets = jax.random.randint(ko, (2,), 0, isize - psize, dtype=jnp.int32)

    out = random_patch_prompt_add(x, patch, offsets)
    out = jax.block_until_ready(out)

    # Pure-numpy reference of the PyTorch forward.
    x0, y0 = int(offsets[0]), int(offsets[1])
    prompt = np.zeros((1, C, isize, isize), dtype=np.float32)
    prompt[:, :, x0:x0 + psize, y0:y0 + psize] = np.asarray(patch[0])
    expected = np.asarray(x) + prompt

    np.testing.assert_allclose(np.asarray(out), expected, rtol=1e-5, atol=1e-5)
    print("KERNEL_OK")
</pallas_src>

<mosaic_0001>
module attributes {stable_mosaic.version = 11 : i64} {
  func.func @_prompt_add_kernel(%arg0: i32, %arg1: memref<2x768xf32, #tpu.memory_space<vmem>>, %arg2: memref<1x768xf32, #tpu.memory_space<vmem>>, %arg3: memref<2x768xf32, #tpu.memory_space<vmem>>) attributes {dimension_semantics = [#tpu.dimension_semantics<parallel>], iteration_bounds = array<i64: 1>, scalar_prefetch = 0 : i64, scratch_operands = 0 : i64, tpu.core_type = #tpu.core_type<tc>, window_params = [{transform_indices = @transform_0, window_bounds = array<i64: 2, 768>}, {pipeline_mode = #tpu.pipeline_mode<synchronous>, transform_indices = @transform_1, window_bounds = array<i64: 1, 768>}, {transform_indices = @transform_2, window_bounds = array<i64: 2, 768>}]} {
    %c0 = arith.constant 0 : index
    %c0_0 = arith.constant 0 : index
    %0 = vector.load %arg1[%c0, %c0_0] : memref<2x768xf32, #tpu.memory_space<vmem>>, vector<2x768xf32>
    %c0_1 = arith.constant 0 : index
    %c0_2 = arith.constant 0 : index
    %1 = vector.load %arg2[%c0_1, %c0_2] : memref<1x768xf32, #tpu.memory_space<vmem>>, vector<1x768xf32>
    %2 = vector.broadcast %1 : vector<1x768xf32> to vector<2x768xf32>
    %3 = arith.addf %0, %2 : vector<2x768xf32>
    %c0_3 = arith.constant 0 : index
    %c0_4 = arith.constant 0 : index
    %4 = vector.load %arg3[%c0_3, %c0_4] : memref<2x768xf32, #tpu.memory_space<vmem>>, vector<2x768xf32>
    tpu.vector_store %arg3[%c0_3, %c0_4], %3 {strides = array<i32>} : memref<2x768xf32, #tpu.memory_space<vmem>>, vector<2x768xf32>,
    return
  }
  func.func @transform_0(%arg0: i32) -> (i32, i32) {
    %c0_i32 = arith.constant 0 : i32
    %c0_i32_0 = arith.constant 0 : i32
    return %arg0, %c0_i32 : i32, i32
  }
  func.func @transform_1(%arg0: i32) -> (i32, i32) {
    %c0_i32 = arith.constant 0 : i32
    %c0_i32_0 = arith.constant 0 : i32
    %c0_i32_1 = arith.constant 0 : i32
    return %c0_i32, %c0_i32_0 : i32, i32
  }
  func.func @transform_2(%arg0: i32) -> (i32, i32) {
    %c0_i32 = arith.constant 0 : i32
    %c0_i32_0 = arith.constant 0 : i32
    return %arg0, %c0_i32 : i32, i32
  }
}

</mosaic_0001>

<llo_original>
// kernel: tpu_custom_call.1
$region0: #{tpu_custom_call.1}
  #allocation0 [shape = 'u32[]', space=smem, size = 0x4, offset = 0x4, fixed_abs, tag = 'smem constant byte address 0x4 - core index']
  #allocation1 [shape = 'u32[72,128]{1,0:T(1,128)}', space=vmem, size = 0x9000, scoped, tag = 'internal scratch']
  %s0 = inlined_call_operand.hbm [shape: f32[2,768], index: 0, kind: input, shape index: {}]
  %s1 = inlined_call_operand.hbm [shape: f32[1,768], index: 1, kind: input, shape index: {}]
  %s2 = inlined_call_operand.hbm [shape: f32[2,768], index: 2, kind: output, shape index: {}]
  %s3 = sld [smem:[#allocation0]]
  $region26: #{tpu_custom_call.1} parent=0
    _
  %s5 = ssub.s32 1, %s3
  %s6 = scalar_select 0, %s5, %s3
  $region1: #{tpu_custom_call.1} parent=0
    #allocation2 [shape = 'u8[6144]{0}', space=vmem, size = 0x1800, scoped, tag = 'input window, operand 0, single buffered']
    #allocation3 [shape = 's32[1]{0}', space=sflag, size = 0x4, scoped, tag = 'scoped memory for tpu_custom_call.1']
    #allocation4 [shape = 's32[1]{0}', space=sflag, size = 0x4, scoped, tag = 'scoped memory for tpu_custom_call.1']
    #allocation5 [shape = 'u8[3072]{0}', space=vmem, size = 0xc00, scoped, tag = 'input window, operand 1, single buffered']
    #allocation6 [shape = 's32[1]{0}', space=sflag, size = 0x4, scoped, tag = 'scoped memory for tpu_custom_call.1']
    #allocation7 [shape = 'u8[6144]{0}', space=vmem, size = 0x1800, scoped, tag = 'output window, operand 0, single buffered']
    %7 = vsyncpa [#allocation3], 0
    %8 = vsyncpa [#allocation6], 0
    %9 = vsyncpa [#allocation4], 0
    // Predicated region
    $region2: #{tpu_custom_call.1} parent=1 // pred_check
      _
    $region3: #{tpu_custom_call.1} parent=1 // pred_check_branch
      %11 = sbr.rel (0) target = $region5
    $region4: #{tpu_custom_call.1} parent=1 // pred_region
      %13 = vsyncadd [#allocation3], 0
      %s15 = sshll.u32 %s0, 4
      %s16 = int_to_ptr.hbm [resolvable:$true] %s15
      %s17 = sshll.u32 [#allocation2], 4
      %s18 = int_to_ptr.vmem [resolvable:$true] %s17
      %20 = dma.hbm_to_vmem [thread:$0]  %s16, 192, %s18, [#allocation3]
    $region5: #{tpu_custom_call.1} parent=1 // pred_fallthru
      _
    // Predicated region
    $region6: #{tpu_custom_call.1} parent=1 // pred_check
      _
    $region7: #{tpu_custom_call.1} parent=1 // pred_check_branch
      %22 = sbr.rel (0) target = $region9
    $region8: #{tpu_custom_call.1} parent=1 // pred_region
      %24 = vsyncadd [#allocation6], 0
      %s26 = sshll.u32 %s1, 4
      %s27 = int_to_ptr.hbm [resolvable:$true] %s26
      %s28 = sshll.u32 [#allocation5], 4
      %s29 = int_to_ptr.vmem [resolvable:$true] %s28
      %31 = dma.hbm_to_vmem [thread:$0]  %s27, 96, %s29, [#allocation6]
    $region9: #{tpu_custom_call.1} parent=1 // pred_fallthru
      _
    // Predicated region
    $region10: #{tpu_custom_call.1} parent=1 // pred_check
      _
    $region11: #{tpu_custom_call.1} parent=1 // pred_check_branch
      %33 = sbr.rel (0) target = $region13
    $region12: #{tpu_custom_call.1} parent=1 // pred_region
      %35 = dma.done [#allocation3], 192
    $region13: #{tpu_custom_call.1} parent=1 // pred_fallthru
      _
    // Predicated region
    $region14: #{tpu_custom_call.1} parent=1 // pred_check
      _
    $region15: #{tpu_custom_call.1} parent=1 // pred_check_branch
      %37 = sbr.rel (0) target = $region17
    $region16: #{tpu_custom_call.1} parent=1 // pred_region
      %39 = dma.done [#allocation6], 96
    $region17: #{tpu_custom_call.1} parent=1 // pred_fallthru
      _
    %v40 = vld [vmem:[#allocation2] sm:$0xff]
    %v41 = vld [vmem:[#allocation2 + $0x8] sm:$0xf]
    %v42 = vld [vmem:[#allocation5] sm:$0x3f]
    %v44 = vperm.slane %v42, 0
    %v45 = vperm.slane %v42, 1
    %v46 = vperm.slane %v42, 2
    %v47 = vperm.slane %v42, 3
    %v48 = vperm.slane %v42, 4
    %v49 = vperm.slane %v42, 5
    %v50 = vrot.slane %v45, 6
    %v51 = vrot.slane %v46, 4
    %v52 = vrot.slane %v47, 2
    %v53 = vrot.slane %v49, 6
    %vm54 = vcmask 1041408
    %v55 = vsel %vm54, %v44, %v50
    %vm56 = vcmask 1045508
    %v57 = vsel %vm56, %v51, %v52
    %vm58 = vcmask 1043456
    %v59 = vsel %vm58, %v55, %v57
    %v60 = vsel %vm54, %v48, %v53
    %v63 = vadd.f32 %v40, %v59
    %v64 = vadd.f32 %v41, %v60
    %65 = vst [vmem:[#allocation7] sm:$0xff] %v63
    %66 = vst [vmem:[#allocation7 + $0x8] sm:$0xf] %v64
    // Predicated region
    $region18: #{tpu_custom_call.1} parent=1 // pred_check
      _
    $region19: #{tpu_custom_call.1} parent=1 // pred_check_branch
      %68 = sbr.rel (0) target = $region21
    $region20: #{tpu_custom_call.1} parent=1 // pred_region
      %70 = vsyncadd [#allocation4], 0
      %s72 = sshll.u32 [#allocation7], 4
      %s73 = int_to_ptr.vmem [resolvable:$true] %s72
      %s74 = sshll.u32 %s2, 4
      %s75 = int_to_ptr.hbm [resolvable:$true] %s74
      %77 = dma.vmem_to_hbm [thread:$0]  %s73, 192, %s75, [#allocation4]
    $region21: #{tpu_custom_call.1} parent=1 // pred_fallthru
      _
    // Predicated region
    $region22: #{tpu_custom_call.1} parent=1 // pred_check
      _
    $region23: #{tpu_custom_call.1} parent=1 // pred_check_branch
      %79 = sbr.rel (0) target = $region25
    $region24: #{tpu_custom_call.1} parent=1 // pred_region
      %81 = dma.done [#allocation4], 192
    $region25: #{tpu_custom_call.1} parent=1 // pred_fallthru
      _
    %82 = vsyncpa [#allocation3], 1
    %83 = vsyncpa [#allocation6], 1
    %84 = vsyncpa [#allocation4], 1

</llo_original>
